<compile_context>
chip_gen: v6e
topology: v6e:2x2x1
jax: 0.10.0
libtpu: 0.0.40
codegen_flags: <defaults>
</compile_context>

<pallas_src>
import functools

import jax
import jax.numpy as jnp
from jax.experimental import pallas as pl
from jax.experimental.pallas import tpu as pltpu


def _seg_acc_counts_kernel(preds_ref, tgt_ref, correct_ref, total_ref,
                           *, hw, tile_hw, tiles_per_split):
    s = pl.program_id(0)    # parallel split (2nd TensorCore on v7x / megacore)
    bi = pl.program_id(1)   # batch image
    ti = pl.program_id(2)   # pixel tile within this split

    @pl.when(jnp.logical_and(bi == 0, ti == 0))
    def _():
        correct_ref[...] = jnp.zeros_like(correct_ref)
        total_ref[...] = jnp.zeros_like(total_ref)

    logits = preds_ref[0]            # (c, tile_hw), native dtype (no upcast)
    tgt = tgt_ref[0]                 # (1, tile_hw) int32
    c = logits.shape[0]

    class_iota = jax.lax.broadcasted_iota(jnp.int32, (c, tile_hw), 0)

    # argmax over the class (sublane) axis, first-index tie-break (matches torch.argmax).
    max_val = jnp.max(logits, axis=0, keepdims=True)            # (1, tile_hw)
    cand = jnp.where(logits == max_val, class_iota, c)
    pred_cls = jnp.min(cand, axis=0, keepdims=True)             # (1, tile_hw)

    # Mask the ragged tail of the last tile (no host-side padding copy).
    tile_idx = s * tiles_per_split + ti
    lane = jax.lax.broadcasted_iota(jnp.int32, (1, tile_hw), 1)
    valid = (tile_idx * tile_hw + lane) < hw                     # (1, tile_hw)

    support = jnp.logical_and(class_iota == tgt, valid)          # (c, tile_hw)
    correct = jnp.logical_and(support, pred_cls == tgt)          # (c, tile_hw)

    # int32 accumulation: exact counts, no bool->f32 casts in the hot loop.
    total_ref[0] += jnp.sum(support.astype(jnp.int32), axis=1, keepdims=True)
    correct_ref[0] += jnp.sum(correct.astype(jnp.int32), axis=1, keepdims=True)


def seg_accuracy_metric(preds, target, num_classes, tile_hw=None):
    """preds: (b, c, h, w) float logits (NCHW); target: (b, h, w) int class ids."""
    if preds.ndim != 4:
        # TODO(synk): 3-D preds (already class indices) branch not implemented.
        raise NotImplementedError("only the 4-D logits path is implemented")
    b, c, h, w = preds.shape
    assert c == num_classes
    hw = h * w

    # Free reshapes only (no transpose, no pad): classes on sublanes, pixels on lanes.
    preds3 = preds.reshape(b, c, hw)
    tgt3 = target.reshape(b, 1, hw).astype(jnp.int32)

    if tile_hw is None:
        # ~2 MiB of (sublane-padded) logits per tile: big enough to amortize per-step
        # overhead, small enough that double-buffering fits every generation's default
        # scoped-VMEM limit (16 MiB on v5e, 32 MiB on v6e/v7x).
        padded_c = -(-c // 8) * 8
        tile_hw = (2 * 1024 * 1024) // (padded_c * preds.dtype.itemsize)
        tile_hw = max(128, (tile_hw // 128) * 128)
    if tile_hw >= hw:
        tile_hw = hw                                   # single full-extent tile is legal
    else:
        tile_hw = max(128, (tile_hw // 128) * 128)     # lane-aligned tiles

    n_tiles = -(-hw // tile_hw)
    # 2-way "parallel" split of the tile range: uses both TensorCores on v7x / megacore,
    # harmless on single-core chips (just one extra tiny partial to sum in the wrapper).
    num_splits = 2 if (n_tiles >= 2 and n_tiles % 2 == 0) else 1
    tiles_per_split = n_tiles // num_splits

    kernel = functools.partial(
        _seg_acc_counts_kernel, hw=hw, tile_hw=tile_hw, tiles_per_split=tiles_per_split)

    def pix_map(s, bi, ti):
        return (bi, 0, s * tiles_per_split + ti)

    correct_counts, total_counts = pl.pallas_call(
        kernel,
        out_shape=(
            jax.ShapeDtypeStruct((num_splits, c, 1), jnp.int32),
            jax.ShapeDtypeStruct((num_splits, c, 1), jnp.int32),
        ),
        grid_spec=pltpu.PrefetchScalarGridSpec(
            num_scalar_prefetch=0,
            grid=(num_splits, b, tiles_per_split),
            in_specs=[
                pl.BlockSpec((1, c, tile_hw), pix_map),
                pl.BlockSpec((1, 1, tile_hw), pix_map),
            ],
            out_specs=[
                pl.BlockSpec((1, c, 1), lambda s, bi, ti: (s, 0, 0)),
                pl.BlockSpec((1, c, 1), lambda s, bi, ti: (s, 0, 0)),
            ],
        ),
        compiler_params=pltpu.CompilerParams(
            dimension_semantics=("parallel", "arbitrary", "arbitrary")),
    )(preds3, tgt3)

    correct = correct_counts.sum(axis=0).reshape(c).astype(jnp.float32)
    total = total_counts.sum(axis=0).reshape(c).astype(jnp.float32)
    return jnp.where(total > 0, correct / jnp.maximum(total, 1.0), 0.0)


def _reference(preds, target, num_classes):
    pred_cls = jnp.argmax(preds, axis=1).reshape(-1)
    tgt = target.reshape(-1)
    accs = []
    for k in range(num_classes):
        sup = tgt == k
        tot = jnp.sum(sup)
        cor = jnp.sum(jnp.logical_and(sup, pred_cls == k))
        accs.append(jnp.where(tot > 0, cor / tot, 0.0))
    return jnp.stack(accs).astype(jnp.float32)


if __name__ == "__main__":
    key = jax.random.PRNGKey(0)
    k1, k2, k3, k4 = jax.random.split(key, 4)

    # Case 1: the module's nominal small shape (b=2, c=4, h=w=16), default tiling.
    num_classes = 4
    b, h, w = 2, 16, 16
    preds = jax.random.normal(k1, (b, num_classes, h, w), dtype=jnp.float32)
    target = jax.random.randint(k2, (b, h, w), 0, num_classes, dtype=jnp.int32)
    acc = jax.block_until_ready(seg_accuracy_metric(preds, target, num_classes))
    ref = _reference(preds, target, num_classes)
    assert acc.shape == (num_classes,)
    assert jnp.allclose(acc, ref, atol=1e-6), (acc, ref)

    # Case 2: ragged spatial size + small explicit tile to exercise the in-kernel tail
    # mask and the 2-way parallel split (hw=400, tile=128 -> 4 tiles, last one partial).
    num_classes2 = 5
    b2, h2, w2 = 2, 20, 20
    preds2 = jax.random.normal(k3, (b2, num_classes2, h2, w2), dtype=jnp.float32)
    target2 = jax.random.randint(k4, (b2, h2, w2), 0, num_classes2, dtype=jnp.int32)
    acc2 = jax.block_until_ready(
        seg_accuracy_metric(preds2, target2, num_classes2, tile_hw=128))
    ref2 = _reference(preds2, target2, num_classes2)
    assert jnp.allclose(acc2, ref2, atol=1e-6), (acc2, ref2)

    print("KERNEL_OK")
</pallas_src>

<mosaic_0001>
module attributes {stable_mosaic.version = 11 : i64} {
  func.func @_seg_acc_counts_kernel(%arg0: i32, %arg1: i32, %arg2: i32, %arg3: memref<1x4x256xf32, #tpu.memory_space<vmem>>, %arg4: memref<1x1x256xi32, #tpu.memory_space<vmem>>, %arg5: memref<1x4x1xi32, #tpu.memory_space<vmem>>, %arg6: memref<1x4x1xi32, #tpu.memory_space<vmem>>) attributes {dimension_semantics = [#tpu.dimension_semantics<parallel>, #tpu.dimension_semantics<arbitrary>, #tpu.dimension_semantics<arbitrary>], iteration_bounds = array<i64: 1, 2, 1>, scalar_prefetch = 0 : i64, scratch_operands = 0 : i64, tpu.core_type = #tpu.core_type<tc>, window_params = [{transform_indices = @transform_0, window_bounds = array<i64: 1, 4, 256>}, {transform_indices = @transform_1, window_bounds = array<i64: 1, 1, 256>}, {transform_indices = @transform_2, window_bounds = array<i64: 1, 4, 1>}, {transform_indices = @transform_3, window_bounds = array<i64: 1, 4, 1>}]} {
    %c0_i32 = arith.constant 0 : i32
    %0 = arith.cmpi eq, %arg1, %c0_i32 : i32
    %c0_i32_0 = arith.constant 0 : i32
    %1 = arith.cmpi eq, %arg2, %c0_i32_0 : i32
    %2 = arith.andi %0, %1 : i1
    %3 = arith.extui %2 : i1 to i32
    %c0_i32_1 = arith.constant 0 : i32
    %4 = arith.cmpi ne, %3, %c0_i32_1 : i32
    scf.if %4 {
      %c0_i32_23 = arith.constant 0 : i32
      %51 = vector.broadcast %c0_i32_23 : i32 to vector<1x4x1xi32>
      %c0_24 = arith.constant 0 : index
      %c0_25 = arith.constant 0 : index
      %c0_26 = arith.constant 0 : index
      %52 = vector.load %arg5[%c0_24, %c0_25, %c0_26] : memref<1x4x1xi32, #tpu.memory_space<vmem>>, vector<1x4x1xi32>
      tpu.vector_store %arg5[%c0_24, %c0_25, %c0_26], %51 {strides = array<i32>} : memref<1x4x1xi32, #tpu.memory_space<vmem>>, vector<1x4x1xi32>,
      %c0_i32_27 = arith.constant 0 : i32
      %53 = vector.broadcast %c0_i32_27 : i32 to vector<1x4x1xi32>
      %c0_28 = arith.constant 0 : index
      %c0_29 = arith.constant 0 : index
      %c0_30 = arith.constant 0 : index
      %54 = vector.load %arg6[%c0_28, %c0_29, %c0_30] : memref<1x4x1xi32, #tpu.memory_space<vmem>>, vector<1x4x1xi32>
      tpu.vector_store %arg6[%c0_28, %c0_29, %c0_30], %53 {strides = array<i32>} : memref<1x4x1xi32, #tpu.memory_space<vmem>>, vector<1x4x1xi32>,
    } else {
    }
    %c0 = arith.constant 0 : index
    %c0_2 = arith.constant 0 : index
    %c0_3 = arith.constant 0 : index
    %5 = vector.load %arg3[%c0, %c0_2, %c0_3] : memref<1x4x256xf32, #tpu.memory_space<vmem>>, vector<1x4x256xf32>
    %6 = vector.shape_cast %5 : vector<1x4x256xf32> to vector<4x256xf32>
    %c0_4 = arith.constant 0 : index
    %c0_5 = arith.constant 0 : index
    %c0_6 = arith.constant 0 : index
    %7 = vector.load %arg4[%c0_4, %c0_5, %c0_6] : memref<1x1x256xi32, #tpu.memory_space<vmem>>, vector<1x1x256xi32>
    %8 = vector.shape_cast %7 : vector<1x1x256xi32> to vector<1x256xi32>
    %9 = tpu.iota {dimensions = array<i32: 0>} : vector<4x256xi32>
    %cst = arith.constant dense<0xFF800000> : vector<256xf32>
    %10 = vector.multi_reduction <maximumf>, %6, %cst [0] : vector<4x256xf32> to vector<256xf32>
    %11 = vector.shape_cast %10 : vector<256xf32> to vector<1x256xf32>
    %12 = vector.broadcast %11 : vector<1x256xf32> to vector<4x256xf32>
    %13 = arith.cmpf oeq, %6, %12 : vector<4x256xf32>
    %c4_i32 = arith.constant 4 : i32
    %14 = vector.broadcast %c4_i32 : i32 to vector<4x256xi32>
    %15 = arith.select %13, %9, %14 : vector<4x256xi1>, vector<4x256xi32>
    %cst_7 = arith.constant dense<2147483647> : vector<256xi32>
    %16 = vector.multi_reduction <minsi>, %15, %cst_7 [0] : vector<4x256xi32> to vector<256xi32>
    %17 = vector.shape_cast %16 : vector<256xi32> to vector<1x256xi32>
    %c1_i32 = arith.constant 1 : i32
    %18 = arith.muli %arg0, %c1_i32 : i32
    %19 = arith.addi %18, %arg2 : i32
    %20 = tpu.iota {dimensions = array<i32: 1>} : vector<1x256xi32>
    %c256_i32 = arith.constant 256 : i32
    %21 = arith.muli %19, %c256_i32 : i32
    %22 = vector.broadcast %21 : i32 to vector<1x256xi32>
    %23 = arith.addi %22, %20 : vector<1x256xi32>
    %c256_i32_8 = arith.constant 256 : i32
    %24 = vector.broadcast %c256_i32_8 : i32 to vector<1x256xi32>
    %25 = arith.cmpi slt, %23, %24 : vector<1x256xi32>
    %26 = vector.broadcast %8 : vector<1x256xi32> to vector<4x256xi32>
    %27 = arith.cmpi eq, %9, %26 : vector<4x256xi32>
    %28 = vector.broadcast %25 : vector<1x256xi1> to vector<4x256xi1>
    %29 = arith.andi %27, %28 : vector<4x256xi1>
    %30 = arith.cmpi eq, %17, %8 : vector<1x256xi32>
    %31 = vector.broadcast %30 : vector<1x256xi1> to vector<4x256xi1>
    %32 = arith.andi %29, %31 : vector<4x256xi1>
    %c0_9 = arith.constant 0 : index
    %c0_10 = arith.constant 0 : index
    %c0_11 = arith.constant 0 : index
    %33 = vector.load %arg6[%c0_9, %c0_10, %c0_11] : memref<1x4x1xi32, #tpu.memory_space<vmem>>, vector<1x4x1xi32>
    %34 = vector.shape_cast %33 : vector<1x4x1xi32> to vector<4x1xi32>
    %35 = arith.extui %29 : vector<4x256xi1> to vector<4x256xi32>
    %cst_12 = arith.constant dense<0> : vector<4xi32>
    %36 = vector.multi_reduction <add>, %35, %cst_12 [1] : vector<4x256xi32> to vector<4xi32>
    %37 = vector.shape_cast %36 : vector<4xi32> to vector<4x1xi32>
    %38 = arith.addi %34, %37 : vector<4x1xi32>
    %c0_13 = arith.constant 0 : index
    %c0_14 = arith.constant 0 : index
    %c0_15 = arith.constant 0 : index
    %39 = vector.load %arg6[%c0_13, %c0_14, %c0_15] : memref<1x4x1xi32, #tpu.memory_space<vmem>>, vector<1x4x1xi32>
    %40 = vector.shape_cast %39 : vector<1x4x1xi32> to vector<4x1xi32>
    %41 = vector.shape_cast %38 : vector<4x1xi32> to vector<1x4x1xi32>
    tpu.vector_store %arg6[%c0_13, %c0_14, %c0_15], %41 {strides = array<i32>} : memref<1x4x1xi32, #tpu.memory_space<vmem>>, vector<1x4x1xi32>,
    %c0_16 = arith.constant 0 : index
    %c0_17 = arith.constant 0 : index
    %c0_18 = arith.constant 0 : index
    %42 = vector.load %arg5[%c0_16, %c0_17, %c0_18] : memref<1x4x1xi32, #tpu.memory_space<vmem>>, vector<1x4x1xi32>
    %43 = vector.shape_cast %42 : vector<1x4x1xi32> to vector<4x1xi32>
    %44 = arith.extui %32 : vector<4x256xi1> to vector<4x256xi32>
    %cst_19 = arith.constant dense<0> : vector<4xi32>
    %45 = vector.multi_reduction <add>, %44, %cst_19 [1] : vector<4x256xi32> to vector<4xi32>
    %46 = vector.shape_cast %45 : vector<4xi32> to vector<4x1xi32>
    %47 = arith.addi %43, %46 : vector<4x1xi32>
    %c0_20 = arith.constant 0 : index
    %c0_21 = arith.constant 0 : index
    %c0_22 = arith.constant 0 : index
    %48 = vector.load %arg5[%c0_20, %c0_21, %c0_22] : memref<1x4x1xi32, #tpu.memory_space<vmem>>, vector<1x4x1xi32>
    %49 = vector.shape_cast %48 : vector<1x4x1xi32> to vector<4x1xi32>
    %50 = vector.shape_cast %47 : vector<4x1xi32> to vector<1x4x1xi32>
    tpu.vector_store %arg5[%c0_20, %c0_21, %c0_22], %50 {strides = array<i32>} : memref<1x4x1xi32, #tpu.memory_space<vmem>>, vector<1x4x1xi32>,
    return
  }
  func.func @transform_0(%arg0: i32, %arg1: i32, %arg2: i32) -> (i32, i32, i32) {
    %c1_i32 = arith.constant 1 : i32
    %0 = arith.muli %arg0, %c1_i32 : i32
    %1 = arith.addi %0, %arg2 : i32
    %c0_i32 = arith.constant 0 : i32
    %c0_i32_0 = arith.constant 0 : i32
    return %arg1, %c0_i32, %1 : i32, i32, i32
  }
  func.func @transform_1(%arg0: i32, %arg1: i32, %arg2: i32) -> (i32, i32, i32) {
    %c1_i32 = arith.constant 1 : i32
    %0 = arith.muli %arg0, %c1_i32 : i32
    %1 = arith.addi %0, %arg2 : i32
    %c0_i32 = arith.constant 0 : i32
    %c0_i32_0 = arith.constant 0 : i32
    return %arg1, %c0_i32, %1 : i32, i32, i32
  }
  func.func @transform_2(%arg0: i32, %arg1: i32, %arg2: i32) -> (i32, i32, i32) {
    %c0_i32 = arith.constant 0 : i32
    %c0_i32_0 = arith.constant 0 : i32
    %c0_i32_1 = arith.constant 0 : i32
    return %arg0, %c0_i32, %c0_i32_0 : i32, i32, i32
  }
  func.func @transform_3(%arg0: i32, %arg1: i32, %arg2: i32) -> (i32, i32, i32) {
    %c0_i32 = arith.constant 0 : i32
    %c0_i32_0 = arith.constant 0 : i32
    %c0_i32_1 = arith.constant 0 : i32
    return %arg0, %c0_i32, %c0_i32_0 : i32, i32, i32
  }
}

</mosaic_0001>

<llo_original>
// kernel: tpu_custom_call.1
$region0: #{tpu_custom_call.1}
  #allocation0 [shape = 'u32[]', space=smem, size = 0x4, offset = 0x4, fixed_abs, tag = 'smem constant byte address 0x4 - core index']
  #allocation1 [shape = 'u32[144,128]{1,0:T(1,128)}', space=vmem, size = 0x12000, scoped, tag = 'internal scratch']
  %s0 = inlined_call_operand.hbm [shape: f32[2,4,256], index: 0, kind: input, shape index: {}]
  %s1 = inlined_call_operand.hbm [shape: s32[2,1,256], index: 1, kind: input, shape index: {}]
  %s2 = inlined_call_operand.vmem [shape: s32[1,4,1], index: 2, kind: output, shape index: {0}]
  %s3 = inlined_call_operand.vmem [shape: s32[1,4,1], index: 3, kind: output, shape index: {1}]
  %4 = xla_tuple %s2, %s3
  %s5 = sld [smem:[#allocation0]]
  $region61: #{tpu_custom_call.1} parent=0
    _
  %s7 = ssub.s32 1, %s5
  %s8 = scalar_select 0, %s7, %s5
  $region1: #{tpu_custom_call.1} parent=0
    #allocation2 [shape = 'u8[8192]{0}', space=vmem, size = 0x2000, scoped, tag = 'input window, operand 0']
    #allocation3 [shape = 's32[2]{0}', space=sflag, size = 0x8, scoped, tag = 'scoped memory for tpu_custom_call.1']
    #allocation4 [shape = 'u8[2048]{0}', space=vmem, size = 0x800, scoped, tag = 'input window, operand 1']
    #allocation5 [shape = 's32[2]{0}', space=sflag, size = 0x8, scoped, tag = 'scoped memory for tpu_custom_call.1']
    %9 = vsyncpa [#allocation3], 0
    %s10 = scalar_lea.sflag [#allocation3], 1
    %11 = vsyncpa %s10, 0
    %12 = vsyncpa [#allocation5], 0
    %s13 = scalar_lea.sflag [#allocation5], 1
    %14 = vsyncpa %s13, 0
    loop: start=0, step=1, limit=4
    $region2: #{tpu_custom_call.1} parent=1 // loop_pre_header
      _
    $region3: #{tpu_custom_call.1} parent=1 // loop_header
      %s16 = sphi 0, %s20
      %p17 = scmp.ge.s32.totalorder %s16, 4
      %s23 = sphi 0, %s42
      %s24 = sphi 0, %s38
      %s25 = sphi 0, %s34
      %s26 = sphi 0, %s23
      %s27 = sphi 0, %s24
      %s28 = sphi 0, %s25
      %s29 = sphi 0, %s26
      %s30 = sphi 0, %s27
      %s31 = sphi 0, %s28
      %s49 = sphi 0, %s51
      %s52 = sphi 0, %s49
      %s53 = sphi 0, %s52
      %s69 = sphi 0, %s53
      %s79 = sphi 0, %s81
      %s82 = sphi 0, %s79
      %s83 = sphi 0, %s82
      %s99 = sphi 0, %s83
      %s105 = sphi 0, %s107
      %s108 = sphi 0, %s105
      %s109 = sphi 0, %s108
      %s125 = sphi 0, %s109
      %s131 = sphi 0, %s133
      %s134 = sphi 0, %s131
      %s135 = sphi 0, %s134
      %s151 = sphi 0, %s135
    $region4: #{tpu_custom_call.1} parent=1 // loop_header_branch
      %19 = sbr.rel (%p17) target = $region8
    $region5: #{tpu_custom_call.1} parent=1 // loop_body
      %s21 = ssub.s32 %s16, 1
      %s22 = ssub.s32 %s16, 2
      %s32 = sadd.s32 1, %s25
      %p33 = scmp.ge.s32.totalorder %s32, 1
      %s34 = scalar_select %p33, 0, %s32
      %s35 = sadd.s32 1, %s24
      %s36 = scalar_select %p33, %s35, %s24
      %p37 = scmp.ge.s32.totalorder %s36, 2
      %s38 = scalar_select %p37, 0, %s36
      %s39 = sadd.s32 1, %s23
      %s40 = scalar_select %p37, %s39, %s23
      %p41 = scmp.ge.s32.totalorder %s40, 1
      %s42 = scalar_select %p41, 0, %s40
      %s43 = sadd.s32 %s23, %s25
      %s44 = sadd.s32 %s42, %s34
      %s45 = ssub.s32 %s24, %s38
      %s46 = ssub.s32 %s43, %s44
      %s47 = sor.u32 %s45, %s46
      %p48 = scmp.eq.s32.totalorder %s47, 0
      %s50 = sadd.s32 %s49, 1
      %s51 = scalar_select %p48, %s49, %s50
      %p54 = pneg %p48
      %p55 = scmp.eq.s32.totalorder %s16, 1
      %p56 = por %p54, %p55
      %p57 = scmp.ne.s32.totalorder %s49, %s52
      %p58 = scmp.eq.s32.totalorder %s16, 0
      %p59 = por %p57, %p58
      %p60 = scmp.ne.s32.totalorder %s49, %s52
      %p61 = scmp.eq.s32.totalorder %s21, 1
      %p62 = por %p60, %p61
      %p63 = scmp.ne.s32.totalorder %s52, %s53
      %p64 = scmp.eq.s32.totalorder %s21, 0
      %p65 = por %p63, %p64
      %p66 = scmp.ne.s32.totalorder %s52, %s53
      %p67 = scmp.eq.s32.totalorder %s22, 1
      %p68 = por %p66, %p67
      %p70 = scmp.ne.s32.totalorder %s53, %s69
      %p71 = scmp.eq.s32.totalorder %s22, 0
      %p72 = por %p70, %p71
      %s73 = sadd.s32 %s23, %s25
      %s74 = sadd.s32 %s42, %s34
      %s75 = ssub.s32 %s24, %s38
      %s76 = ssub.s32 %s73, %s74
      %s77 = sor.u32 %s75, %s76
      %p78 = scmp.eq.s32.totalorder %s77, 0
      %s80 = sadd.s32 %s79, 1
      %s81 = scalar_select %p78, %s79, %s80
      %p84 = pneg %p78
      %p85 = scmp.eq.s32.totalorder %s16, 1
      %p86 = por %p84, %p85
      %p87 = scmp.ne.s32.totalorder %s79, %s82
      %p88 = scmp.eq.s32.totalorder %s16, 0
      %p89 = por %p87, %p88
      %p90 = scmp.ne.s32.totalorder %s79, %s82
      %p91 = scmp.eq.s32.totalorder %s21, 1
      %p92 = por %p90, %p91
      %p93 = scmp.ne.s32.totalorder %s82, %s83
      %p94 = scmp.eq.s32.totalorder %s21, 0
      %p95 = por %p93, %p94
      %p96 = scmp.ne.s32.totalorder %s82, %s83
      %p97 = scmp.eq.s32.totalorder %s22, 1
      %p98 = por %p96, %p97
      %p100 = scmp.ne.s32.totalorder %s83, %s99
      %p101 = scmp.eq.s32.totalorder %s22, 0
      %p102 = por %p100, %p101
      %s103 = ssub.s32 %s23, %s42
      %p104 = scmp.eq.s32.totalorder %s103, 0
      %s106 = sadd.s32 %s105, 1
      %s107 = scalar_select %p104, %s105, %s106
      %p110 = pneg %p104
      %p111 = scmp.eq.s32.totalorder %s16, 1
      %p112 = por %p110, %p111
      %p113 = scmp.ne.s32.totalorder %s105, %s108
      %p114 = scmp.eq.s32.totalorder %s16, 0
      %p115 = por %p113, %p114
      %p116 = scmp.ne.s32.totalorder %s105, %s108
      %p117 = scmp.eq.s32.totalorder %s21, 1
      %p118 = por %p116, %p117
      %p119 = scmp.ne.s32.totalorder %s108, %s109
      %p120 = scmp.eq.s32.totalorder %s21, 0
      %p121 = por %p119, %p120
      %p122 = scmp.ne.s32.totalorder %s108, %s109
      %p123 = scmp.eq.s32.totalorder %s22, 1
      %p124 = por %p122, %p123
      %p126 = scmp.ne.s32.totalorder %s109, %s125
      %p127 = scmp.eq.s32.totalorder %s22, 0
      %p128 = por %p126, %p127
      %s129 = ssub.s32 %s23, %s42
      %p130 = scmp.eq.s32.totalorder %s129, 0
      %s132 = sadd.s32 %s131, 1
      %s133 = scalar_select %p130, %s131, %s132
      %p136 = pneg %p130
      %p137 = scmp.eq.s32.totalorder %s16, 1
      %p138 = por %p136, %p137
      %p139 = scmp.ne.s32.totalorder %s131, %s134
      %p140 = scmp.eq.s32.totalorder %s16, 0
      %p141 = por %p139, %p140
      %p142 = scmp.ne.s32.totalorder %s131, %s134
      %p143 = scmp.eq.s32.totalorder %s21, 1
      %p144 = por %p142, %p143
      %p145 = scmp.ne.s32.totalorder %s134, %s135
      %p146 = scmp.eq.s32.totalorder %s21, 0
      %p147 = por %p145, %p146
      %p148 = scmp.ne.s32.totalorder %s134, %s135
      %p149 = scmp.eq.s32.totalorder %s22, 1
      %p150 = por %p148, %p149
      %p152 = scmp.ne.s32.totalorder %s135, %s151
      %p153 = scmp.eq.s32.totalorder %s22, 0
      %p154 = por %p152, %p153
      %p155 = scmp.le.s32.totalorder 1, %s16
      %p156 = scmp.lt.s32.totalorder %s16, 3
      %p157 = pnand %p155, %p156
      %p158 = pneg %p157
      // Predicated region
      $region9: #{tpu_custom_call.1} parent=5 // pred_check
        _
      $region10: #{tpu_custom_call.1} parent=5 // pred_check_branch
        %160 = sbr.rel (%p157) target = $region12
      $region11: #{tpu_custom_call.1} parent=5 // pred_region
        %s161 = ssub.s32 %s16, 1
      $region12: #{tpu_custom_call.1} parent=5 // pred_fallthru
        _
      %p162 = scmp.lt.s32.totalorder %s16, 2
      // Predicated region
      $region13: #{tpu_custom_call.1} parent=5 // pred_check
        %p163 = pneg %p162
      $region14: #{tpu_custom_call.1} parent=5 // pred_check_branch
        %165 = sbr.rel (%p163) target = $region16
      $region15: #{tpu_custom_call.1} parent=5 // pred_region
        // Predicated region
        $region17: #{tpu_custom_call.1} parent=15 // pred_check
          %p166 = pneg %p59
        $region18: #{tpu_custom_call.1} parent=15 // pred_check_branch
          %168 = sbr.rel (%p166) target = $region20
        $region19: #{tpu_custom_call.1} parent=15 // pred_region
          %s169 = sand.u32 %s49, 1
          %s170 = scalar_lea.sflag [#allocation3], %s169
          %s171 = sand.u32 %s49, 1
          %s172 = smul.addr %s171, 8
          %s173 = scalar_lea.vmem [#allocation2], %s172
          %s174 = sadd.s32 %s23, %s25
          %s175 = smul.u32 2, %s174
          %s177 = ssub.s32 128, 128
          %178 = vsyncadd %s170, %s177
          %s179 = smul.addr %s24, 2
          %s180 = sadd.s32 %s175, %s179
          %s181 = smul.addr %s180, 64
          %s182 = scalar_lea.hbm %s0, %s181
          %s184 = sshll.u32 %s173, 4
          %s185 = int_to_ptr.vmem [resolvable:$true] %s184
          %187 = dma.hbm_to_vmem [thread:$0]  %s182, 128, %s185, %s170
        $region20: #{tpu_custom_call.1} parent=15 // pred_fallthru
          _
        // Predicated region
        $region21: #{tpu_custom_call.1} parent=15 // pred_check
          %p188 = pneg %p89
        $region22: #{tpu_custom_call.1} parent=15 // pred_check_branch
          %190 = sbr.rel (%p188) target = $region24
        $region23: #{tpu_custom_call.1} parent=15 // pred_region
          %s191 = sand.u32 %s79, 1
          %s192 = scalar_lea.sflag [#allocation5], %s191
          %s193 = sand.u32 %s79, 1
          %s194 = smul.addr %s193, 2
          %s195 = scalar_lea.vmem [#allocation4], %s194
          %s196 = sadd.s32 %s23, %s25
          %s197 = smul.u32 2, %s196
          %s199 = ssub.s32 32, 32
          %200 = vsyncadd %s192, %s199
          %s201 = smul.addr %s24, 2
          %s202 = sadd.s32 %s197, %s201
          %s203 = smul.addr %s202, 16
          %s204 = scalar_lea.hbm %s1, %s203
          %s206 = sshll.u32 %s195, 4
          %s207 = int_to_ptr.vmem [resolvable:$true] %s206
          %209 = dma.hbm_to_vmem [thread:$0]  %s204, 32, %s207, %s192
        $region24: #{tpu_custom_call.1} parent=15 // pred_fallthru
          _
      $region16: #{tpu_custom_call.1} parent=5 // pred_fallthru
        _
      %p210 = scmp.le.s32.totalorder 1, %s16
      %p211 = scmp.lt.s32.totalorder %s16, 3
      %p212 = pnand %p210, %p211
      %p213 = pneg %p212
      // Predicated region
      $region25: #{tpu_custom_call.1} parent=5 // pred_check
        _
      $region26: #{tpu_custom_call.1} parent=5 // pred_check_branch
        %215 = sbr.rel (%p212) target = $region28
      $region27: #{tpu_custom_call.1} parent=5 // pred_region
        %s216 = ssub.s32 %s16, 1
        %s217 = sand.u32 %s52, 1
        %s218 = scalar_lea.sflag [#allocation3], %s217
        %s219 = sand.u32 %s52, 1
        %s220 = smul.addr %s219, 8
        %s221 = scalar_lea.vmem [#allocation2], %s220
        // Predicated region
        $region29: #{tpu_custom_call.1} parent=27 // pred_check
          %p222 = pneg %p65
        $region30: #{tpu_custom_call.1} parent=27 // pred_check_branch
          %224 = sbr.rel (%p222) target = $region32
        $region31: #{tpu_custom_call.1} parent=27 // pred_region
          %225 = dma.done %s218, 128
        $region32: #{tpu_custom_call.1} parent=27 // pred_fallthru
          _
        %s226 = sand.u32 %s82, 1
        %s227 = scalar_lea.sflag [#allocation5], %s226
        %s228 = sand.u32 %s82, 1
        %s229 = smul.addr %s228, 2
        %s230 = scalar_lea.vmem [#allocation4], %s229
        // Predicated region
        $region33: #{tpu_custom_call.1} parent=27 // pred_check
          %p231 = pneg %p95
        $region34: #{tpu_custom_call.1} parent=27 // pred_check_branch
          %233 = sbr.rel (%p231) target = $region36
        $region35: #{tpu_custom_call.1} parent=27 // pred_region
          %234 = dma.done %s227, 32
        $region36: #{tpu_custom_call.1} parent=27 // pred_fallthru
          _
        %s235 = sand.u32 %s52, 1
        %s236 = scalar_lea.sflag [#allocation3], %s235
        %s237 = sand.u32 %s52, 1
        %s238 = smul.addr %s237, 8
        %s239 = scalar_lea.vmem [#allocation2], %s238
        %p240 = pneg %p65
        %p241 = pneg %p62
        %s242 = sand.u32 %s82, 1
        %s243 = scalar_lea.sflag [#allocation5], %s242
        %s244 = sand.u32 %s82, 1
        %s245 = smul.addr %s244, 2
        %s246 = scalar_lea.vmem [#allocation4], %s245
        %p247 = pneg %p95
        %p248 = pneg %p92
        %p249 = pneg %p121
        %p250 = pneg %p118
        %p251 = scmp.lt.s32.totalorder %s26, 0
        %s252 = scalar_select %p251, %s26, 0
        %s253 = smul.addr %s252, 4
        %s254 = scalar_lea.vmem %s2, %s253
        %p255 = pneg %p147
        %p256 = pneg %p144
        %p257 = scmp.lt.s32.totalorder %s26, 0
        %s258 = scalar_select %p257, %s26, 0
        %s259 = smul.addr %s258, 4
        %s260 = scalar_lea.vmem %s3, %s259
        %s261 = sadd.s32 %s26, %s28
        %s262 = smul.u32 2, %s261
        %s263 = sadd.s32 %s26, %s28
        %s264 = smul.u32 2, %s263
        %p265 = scmp.lt.s32.totalorder %s26, 0
        %s266 = scalar_select %p265, %s26, 0
        %s267 = smul.addr %s266, 4
        %s268 = scalar_lea.vmem %s2, %s267
        %p269 = scmp.lt.s32.totalorder %s26, 0
        %s270 = scalar_select %p269, %s26, 0
        %s271 = smul.addr %s270, 4
        %s272 = scalar_lea.vmem %s3, %s271
        %p273 = scmp.eq.s32.totalorder %s27, 0
        %p274 = scmp.eq.s32.totalorder %s28, 0
        %p275 = pnand %p273, %p274
        %p276 = pneg %p275
        // Predicated region
        $region37: #{tpu_custom_call.1} parent=27 // pred_check
          _
        $region38: #{tpu_custom_call.1} parent=27 // pred_check_branch
          %278 = sbr.rel (%p275) target = $region40
        $region39: #{tpu_custom_call.1} parent=27 // pred_region
          %vm279 = vcmask 3072
          %280 = vst.msk [vmem:[%s268] sm:$0xf] %vm279, 0
          %281 = vst.msk [vmem:[%s272] sm:$0xf] %vm279, 0
        $region40: #{tpu_custom_call.1} parent=27 // pred_fallthru
          _
        %v282 = vld [vmem:[%s221] sm:$0xff]
        %v283 = vld [vmem:[%s230] sm:$0x3]
        %v284 = vlaneseq
        %v285 = vshrl.u32 %v284, 7
        %v287 = vcombine.high %v282, %v282
        %vm289 = vcmask 1043456
        %v290 = vsel %vm289, %v282, -inf
        %v291 = vrot.slane %v290, 4
        %v292 = vmax.f32 %v290, %v291
        %v293 = vrot.slane %v292, 2
        %v294 = vmax.f32 %v292, %v293
        %v295 = vrot.slane %v294, 1
        %v296 = vmax.f32 %v294, %v295
        %v297 = vsel %vm289, %v287, -inf
        %v298 = vrot.slane %v297, 4
        %v299 = vmax.f32 %v297, %v298
        %v300 = vrot.slane %v299, 2
        %v301 = vmax.f32 %v299, %v300
        %v302 = vrot.slane %v301, 1
        %v303 = vmax.f32 %v301, %v302
        %v306 = vcombine.low %v296, %v303
        %vm308 = vcmp.eq.f32.partialorder %v282, %v306
        %v310 = vunpack.c.l.s4 839922192
        %v311 = vunpack.c.0.s8 %v310
        %v312 = vlaneseq
        %v313 = vshrl.u32 %v312, 7
        %v314 = vsub.s32 %v311, %v313
        %v315 = vrot.slane %v285, %v314
        %v316 = vsel %vm308, %v315, 4
        %v317 = vcombine.high %v316, %v316
        %v318 = vsel %vm289, %v316, 2147483647
        %v319 = vrot.slane %v318, 4
        %vm320 = vcmp.lt.s32.totalorder %v318, %v319
        %v321 = vsel %vm320, %v318, %v319
        %v322 = vrot.slane %v321, 2
        %vm323 = vcmp.lt.s32.totalorder %v321, %v322
        %v324 = vsel %vm323, %v321, %v322
        %v325 = vrot.slane %v324, 1
        %vm326 = vcmp.lt.s32.totalorder %v324, %v325
        %v327 = vsel %vm326, %v324, %v325
        %v328 = vsel %vm289, %v317, 2147483647
        %v329 = vrot.slane %v328, 4
        %vm330 = vcmp.lt.s32.totalorder %v328, %v329
        %v331 = vsel %vm330, %v328, %v329
        %v332 = vrot.slane %v331, 2
        %vm333 = vcmp.lt.s32.totalorder %v331, %v332
        %v334 = vsel %vm333, %v331, %v332
        %v335 = vrot.slane %v334, 1
        %vm336 = vcmp.lt.s32.totalorder %v334, %v335
        %v337 = vsel %vm336, %v334, %v335
        %s338 = sadd.s32 %s26, %s28
        %v339 = vlaneseq
        %v340 = vand.u32 %v339, 127
        %v341 = vadd.s32 %v340, 128
        %s342 = smul.u32 %s338, 256
        %v343 = vstv %s342
        %v344 = vadd.s32 %v343, %v340
        %v345 = vadd.s32 %v343, %v341
        %vm346 = vcmp.lt.s32.totalorder %v344, 256
        %vm347 = vcmp.lt.s32.totalorder %v345, 256
        %v348 = vlaneseq
        %v349 = vshrl.u32 %v348, 7
        %v350 = vsub.s32 0, %v349
        %v351 = vrot.slane %v283, %v350
        %v352 = vlaneseq
        %v353 = vshrl.u32 %v352, 7
        %v354 = vsub.s32 1, %v353
        %v355 = vrot.slane %v283, %v354
        %vm356 = vcmp.eq.s32.totalorder %v285, %v351
        %vm357 = vcmp.eq.s32.totalorder %v285, %v355
        %v358 = vsel %vm346, 1, 0
        %v359 = vsel %vm347, 1, 0
        %vm360 = vcmp.eq.s32.totalorder %v358, 1
        %vm361 = vcmp.eq.s32.totalorder %v359, 1
        %vm362 = vmand %vm356, %vm360
        %vm363 = vmand %vm357, %vm361
        %vm364 = vcmp.eq.s32.totalorder %v327, %v351
        %vm365 = vcmp.eq.s32.totalorder %v337, %v355
        %v366 = vsel %vm364, 1, 0
        %v367 = vsel %vm365, 1, 0
        %v368 = vlaneseq
        %v369 = vshrl.u32 %v368, 7
        %v370 = vsub.s32 0, %v369
        %v371 = vrot.slane %v366, %v370
        %v372 = vlaneseq
        %v373 = vshrl.u32 %v372, 7
        %v374 = vsub.s32 0, %v373
        %v375 = vrot.slane %v367, %v374
        %vm376 = vcmp.eq.s32.totalorder %v371, 1
        %vm377 = vcmp.eq.s32.totalorder %v375, 1
        %vm378 = vmand %vm362, %vm376
        %vm379 = vmand %vm363, %vm377
        %v380 = vld [vmem:[%s272] sm:$0xf]
        %v381 = vsel %vm362, 1, 0
        %v382 = vsel %vm363, 1, 0
        %v383 = vsel %vm289, %v381, 0
        %v384 = vsel %vm289, %v382, 0
        %v385 = vadd.s32 %v383, %v384
        %v386 = vand.u32 %v385, 65535
        %v387 = vshrl.u32 %v385, 16
        %v388 = vcvt.s32.f32 %v386
        %v389 = vcvt.s32.f32 %v387
        %390 = vadd.xlane.f32.xlu0 %v388
        %v391 = vpop.xlane.xlu0 %390
        %392 = vadd.xlane.f32.xlu0 %v389
        %v393 = vpop.xlane.xlu0 %392
        %v394 = vcvt.f32.s32 %v391
        %v395 = vcvt.f32.s32 %v393
        %v396 = vshll.u32 %v395, 16
        %v397 = vadd.s32 %v396, %v394
        %v398 = vadd.s32 %v380, %v397
        %vm399 = vcmask 3072
        %400 = vst.msk [vmem:[%s272] sm:$0xf] %vm399, %v398
        %v401 = vld [vmem:[%s268] sm:$0xf]
        %v402 = vsel %vm378, 1, 0
        %v403 = vsel %vm379, 1, 0
        %v404 = vsel %vm289, %v402, 0
        %v405 = vsel %vm289, %v403, 0
        %v406 = vadd.s32 %v404, %v405
        %v407 = vand.u32 %v406, 65535
        %v408 = vshrl.u32 %v406, 16
        %v409 = vcvt.s32.f32 %v407
        %v410 = vcvt.s32.f32 %v408
        %411 = vadd.xlane.f32.xlu0 %v409
        %v412 = vpop.xlane.xlu0 %411
        %413 = vadd.xlane.f32.xlu0 %v410
        %v414 = vpop.xlane.xlu0 %413
        %v415 = vcvt.f32.s32 %v412
        %v416 = vcvt.f32.s32 %v414
        %v417 = vshll.u32 %v416, 16
        %v418 = vadd.s32 %v417, %v415
        %v419 = vadd.s32 %v401, %v418
        %420 = vst.msk [vmem:[%s268] sm:$0xf] %vm399, %v419
        %p421 = scmp.lt.s32.totalorder %s26, 0
        %s422 = scalar_select %p421, %s26, 0
        %s423 = smul.addr %s422, 4
        %s424 = scalar_lea.vmem %s2, %s423
        %p425 = scmp.lt.s32.totalorder %s26, 0
        %s426 = scalar_select %p425, %s26, 0
        %s427 = smul.addr %s426, 4
        %s428 = scalar_lea.vmem %s3, %s427
        // Predicated region
        $region41: #{tpu_custom_call.1} parent=27 // pred_check
          %p429 = pneg %p118
        $region42: #{tpu_custom_call.1} parent=27 // pred_check_branch
          %431 = sbr.rel (%p429) target = $region44
        $region43: #{tpu_custom_call.1} parent=27 // pred_region
          _
        $region44: #{tpu_custom_call.1} parent=27 // pred_fallthru
          _
        // Predicated region
        $region45: #{tpu_custom_call.1} parent=27 // pred_check
          %p432 = pneg %p144
        $region46: #{tpu_custom_call.1} parent=27 // pred_check_branch
          %434 = sbr.rel (%p432) target = $region48
        $region47: #{tpu_custom_call.1} parent=27 // pred_region
          _
        $region48: #{tpu_custom_call.1} parent=27 // pred_fallthru
          _
        // Predicated region
        $region49: #{tpu_custom_call.1} parent=27 // pred_check
          %p435 = pneg %p118
        $region50: #{tpu_custom_call.1} parent=27 // pred_check_branch
          %437 = sbr.rel (%p435) target = $region52
        $region51: #{tpu_custom_call.1} parent=27 // pred_region
          %p438 = scmp.lt.s32.totalorder %s26, 0
          %s439 = scalar_select %p438, %s26, 0
          %s440 = smul.addr %s439, 4
          %s441 = scalar_lea.vmem %s2, %s440
        $region52: #{tpu_custom_call.1} parent=27 // pred_fallthru
          _
        // Predicated region
        $region53: #{tpu_custom_call.1} parent=27 // pred_check
          %p442 = pneg %p144
        $region54: #{tpu_custom_call.1} parent=27 // pred_check_branch
          %444 = sbr.rel (%p442) target = $region56
        $region55: #{tpu_custom_call.1} parent=27 // pred_region
          %p445 = scmp.lt.s32.totalorder %s26, 0
          %s446 = scalar_select %p445, %s26, 0
          %s447 = smul.addr %s446, 4
          %s448 = scalar_lea.vmem %s3, %s447
        $region56: #{tpu_custom_call.1} parent=27 // pred_fallthru
          _
      $region28: #{tpu_custom_call.1} parent=5 // pred_fallthru
        _
      %p449 = scmp.le.s32.totalorder 2, %s16
      // Predicated region
      $region57: #{tpu_custom_call.1} parent=5 // pred_check
        %p450 = pneg %p449
      $region58: #{tpu_custom_call.1} parent=5 // pred_check_branch
        %452 = sbr.rel (%p450) target = $region60
      $region59: #{tpu_custom_call.1} parent=5 // pred_region
        %s453 = ssub.s32 %s16, 2
      $region60: #{tpu_custom_call.1} parent=5 // pred_fallthru
        _
    $region6: #{tpu_custom_call.1} parent=1 // loop_footer
      %s20 = sadd.s32 1, %s16
    $region7: #{tpu_custom_call.1} parent=1 // loop_footer_branch
      %15 = sbr.rel target = $region3
    $region8: #{tpu_custom_call.1} parent=1 // loop_exit
      _
    %454 = vsyncpa [#allocation3], 1
    %s455 = scalar_lea.sflag [#allocation3], 1
    %456 = vsyncpa %s455, 1
    %457 = vsyncpa [#allocation5], 1
    %s458 = scalar_lea.sflag [#allocation5], 1
    %459 = vsyncpa %s458, 1

</llo_original>
